<compile_context>
chip_gen: v7x
topology: tpu7x:2x2x1
jax: 0.10.0
libtpu: 0.0.40
codegen_flags: <defaults>
</compile_context>

<pallas_src>
import functools

import jax
import jax.numpy as jnp
from jax.experimental import pallas as pl
from jax.experimental.pallas import tpu as pltpu

_MiB = 1024 * 1024
_FUSED_SLAB_BUDGET = 36 * _MiB    # 2x(in) + 2x(out) slab buffers + resident weights
_STREAM_TILE_BUDGET = 8 * _MiB    # per x-tile budget for the streaming 2-pass path
_VMEM_LIMIT = 48 * _MiB           # scoped-VMEM request safe on v5e / v6e / v7x


def _round_up(x, m):
    return (x + m - 1) // m * m


def _choose_l_tile(c, l, itemsize, max_l_tile=None):
    """Lane-dense L tile: either the full (possibly unaligned) L, or a multiple of
    128 sized so one (C, tl) tile stays under the streaming budget."""
    if l <= 128:
        return l                                   # full-dim block: always legal
    max_tl = max(128, (_STREAM_TILE_BUDGET // max(c * itemsize, 1)) // 128 * 128)
    if max_l_tile is not None:
        max_tl = min(max_tl, max(128, max_l_tile // 128 * 128))
    return min(_round_up(l, 128), max_tl)


# --------------------------- fused single-pass kernel --------------------------------
def _se_fused_kernel(x_ref, w1_ref, b1_ref, a_ref, w2_ref, b2_ref, o_ref, *, inv_l):
    xs = x_ref[0]                                                        # (C, L) native
    y = jnp.sum(xs.astype(jnp.float32), axis=-1, keepdims=True) * inv_l  # (C, 1) mean
    h = jnp.dot(w1_ref[...], y, preferred_element_type=jnp.float32) + b1_ref[...]
    a = a_ref[0, 0]                                                      # PReLU slope
    h = jnp.where(h >= 0, h, a * h)                                      # (H, 1)
    s = jnp.dot(w2_ref[...], h, preferred_element_type=jnp.float32) + b2_ref[...]
    scale = jax.nn.sigmoid(s).astype(xs.dtype)                           # (C, 1)
    o_ref[0] = xs * scale                                                # lane-broadcast


# ----------------------- phase 1: reduce over L + excitation FC ----------------------
def _se_reduce_kernel(x_ref, w1_ref, b1_ref, a_ref, w2_ref, b2_ref, s_ref, acc_ref,
                      *, inv_l, l_total, tl, mask_tail):
    l = pl.program_id(1)

    @pl.when(l == 0)
    def _():
        acc_ref[...] = jnp.zeros_like(acc_ref)

    xt = x_ref[0].astype(jnp.float32)                                    # (C, tl)
    if mask_tail:
        # Last tile may read past L: zero the out-of-range lanes before summing.
        col = jax.lax.broadcasted_iota(jnp.int32, xt.shape, 1)
        xt = jnp.where(col < l_total - l * tl, xt, 0.0)
    acc_ref[...] += jnp.sum(xt, axis=-1, keepdims=True)                  # (C, 1)

    @pl.when(l == pl.num_programs(1) - 1)
    def _():
        y = acc_ref[...] * inv_l                                         # mean over L
        h = jnp.dot(w1_ref[...], y, preferred_element_type=jnp.float32) + b1_ref[...]
        a = a_ref[0, 0]
        h = jnp.where(h >= 0, h, a * h)
        s = jnp.dot(w2_ref[...], h, preferred_element_type=jnp.float32) + b2_ref[...]
        s_ref[0] = jax.nn.sigmoid(s)                                     # (C, 1) f32


# ----------------------------- phase 2: broadcast scale ------------------------------
def _se_scale_kernel(x_ref, s_ref, o_ref):
    # x: (1, C, TL) native dtype; s: (1, C, 1) f32 -> cast once, multiply in x's dtype.
    o_ref[...] = x_ref[...] * s_ref[...].astype(o_ref.dtype)


# --------------------------------- path implementations ------------------------------
def _se_fused(x, w1, b1, prelu_a, w2, b2):
    B, C, L = x.shape
    H = w1.shape[0]
    return pl.pallas_call(
        functools.partial(_se_fused_kernel, inv_l=1.0 / float(L)),
        out_shape=jax.ShapeDtypeStruct((B, C, L), x.dtype),
        grid_spec=pltpu.PrefetchScalarGridSpec(
            num_scalar_prefetch=0,
            grid=(B,),
            in_specs=[
                pl.BlockSpec((1, C, L), lambda b: (b, 0, 0)),            # x slab
                pl.BlockSpec((H, C), lambda b: (0, 0)),                  # w1 (resident)
                pl.BlockSpec((H, 1), lambda b: (0, 0)),                  # b1
                pl.BlockSpec((1, 1), lambda b: (0, 0),
                             memory_space=pltpu.MemorySpace.SMEM),       # PReLU slope
                pl.BlockSpec((C, H), lambda b: (0, 0)),                  # w2
                pl.BlockSpec((C, 1), lambda b: (0, 0)),                  # b2
            ],
            out_specs=pl.BlockSpec((1, C, L), lambda b: (b, 0, 0)),
        ),
        compiler_params=pltpu.CompilerParams(
            dimension_semantics=("parallel",),
            vmem_limit_bytes=_VMEM_LIMIT,
        ),
    )(x, w1, b1, prelu_a, w2, b2)


def _se_two_pass(x, w1, b1, prelu_a, w2, b2, max_l_tile=None):
    B, C, L = x.shape
    H = w1.shape[0]
    tl = _choose_l_tile(C, L, x.dtype.itemsize, max_l_tile)
    n_l = pl.cdiv(L, tl)
    tile_bytes = C * tl * x.dtype.itemsize
    # TODO(synk): for extremely large C (C * 128 * itemsize >> budget) add channel
    # tiling so the double-buffered working set stays under v7x's 64 MiB VMEM.
    vmem_limit = min(max(_VMEM_LIMIT, 6 * tile_bytes), 100 * _MiB)

    # ---- phase 1: per-(b, c) mean -> FC -> PReLU -> sigmoid, shape (B, C, 1) f32 ----
    s_col = pl.pallas_call(
        functools.partial(_se_reduce_kernel, inv_l=1.0 / float(L),
                          l_total=L, tl=tl, mask_tail=(L % tl != 0)),
        out_shape=jax.ShapeDtypeStruct((B, C, 1), jnp.float32),
        grid_spec=pltpu.PrefetchScalarGridSpec(
            num_scalar_prefetch=0,
            grid=(B, n_l),
            in_specs=[
                pl.BlockSpec((1, C, tl), lambda b, l: (b, 0, l)),        # x tile
                pl.BlockSpec((H, C), lambda b, l: (0, 0)),               # w1 (resident)
                pl.BlockSpec((H, 1), lambda b, l: (0, 0)),               # b1
                pl.BlockSpec((1, 1), lambda b, l: (0, 0),
                             memory_space=pltpu.MemorySpace.SMEM),       # PReLU slope
                pl.BlockSpec((C, H), lambda b, l: (0, 0)),               # w2
                pl.BlockSpec((C, 1), lambda b, l: (0, 0)),               # b2
            ],
            out_specs=pl.BlockSpec((1, C, 1), lambda b, l: (b, 0, 0)),
            scratch_shapes=[pltpu.VMEM((C, 1), jnp.float32)],
        ),
        compiler_params=pltpu.CompilerParams(
            dimension_semantics=("parallel", "arbitrary"),
            vmem_limit_bytes=vmem_limit,
        ),
    )(x, w1, b1, prelu_a, w2, b2)

    # ---- phase 2: stream x again and apply the per-channel scale --------------------
    return pl.pallas_call(
        _se_scale_kernel,
        out_shape=jax.ShapeDtypeStruct((B, C, L), x.dtype),
        grid_spec=pltpu.PrefetchScalarGridSpec(
            num_scalar_prefetch=0,
            grid=(B, n_l),
            in_specs=[
                pl.BlockSpec((1, C, tl), lambda b, l: (b, 0, l)),        # x tile
                pl.BlockSpec((1, C, 1), lambda b, l: (b, 0, 0)),         # scale
            ],
            out_specs=pl.BlockSpec((1, C, tl), lambda b, l: (b, 0, l)),
        ),
        compiler_params=pltpu.CompilerParams(
            dimension_semantics=("parallel", "parallel"),
            vmem_limit_bytes=vmem_limit,
        ),
    )(x, s_col)


# --------------------------------------- wrapper -------------------------------------
@functools.partial(jax.jit, static_argnames=("force_two_pass", "max_l_tile"))
def se_layer(x, w1, b1, prelu_a, w2, b2, force_two_pass=False, max_l_tile=None):
    """x: (B, C, L); w1: (H, C); b1: (H, 1); prelu_a: (1, 1); w2: (C, H); b2: (C, 1)."""
    B, C, L = x.shape
    H = w1.shape[0]
    slab_bytes = C * L * x.dtype.itemsize
    weight_bytes = 4 * (2 * H * C + H + C)
    if not force_two_pass and (4 * slab_bytes + 4 * weight_bytes) <= _FUSED_SLAB_BUDGET:
        return _se_fused(x, w1, b1, prelu_a, w2, b2)
    return _se_two_pass(x, w1, b1, prelu_a, w2, b2, max_l_tile)


def init_params(key, c_in, hidden):
    """Mirror PyTorch defaults: nn.Linear uniform(+-1/sqrt(fan_in)), nn.PReLU 0.25.
    Weights in PyTorch layout (out, in); biases as column vectors (out, 1)."""
    k1, k2, k3, k4 = jax.random.split(key, 4)
    lim1 = 1.0 / (c_in ** 0.5)
    lim2 = 1.0 / (hidden ** 0.5)
    w1 = jax.random.uniform(k1, (hidden, c_in), jnp.float32, -lim1, lim1)
    b1 = jax.random.uniform(k2, (hidden, 1), jnp.float32, -lim1, lim1)
    w2 = jax.random.uniform(k3, (c_in, hidden), jnp.float32, -lim2, lim2)
    b2 = jax.random.uniform(k4, (c_in, 1), jnp.float32, -lim2, lim2)
    prelu_a = jnp.full((1, 1), 0.25, jnp.float32)
    return w1, b1, prelu_a, w2, b2


def se_layer_ref(x, w1, b1, prelu_a, w2, b2):
    # Pure-JAX reference for correctness check.
    y = jnp.mean(x, axis=-1)                                  # (B, C)
    h = y @ w1.T + b1[:, 0]                                   # (B, H)
    h = jnp.where(h >= 0, h, prelu_a[0, 0] * h)
    s = jax.nn.sigmoid(h @ w2.T + b2[:, 0])                   # (B, C)
    return x * s[:, :, None]


if __name__ == "__main__":
    key = jax.random.PRNGKey(0)
    kx1, kp1, kx2, kp2 = jax.random.split(key, 4)

    # Case 1: SELayer(_in=C, _hidden=H) on (B, C, L) features -> fused single-pass path.
    B, C, L, H = 2, 4, 16, 32
    x = jax.random.normal(kx1, (B, C, L), jnp.float32)
    params = init_params(kp1, C, H)
    out = jax.block_until_ready(se_layer(x, *params))
    assert out.shape == (B, C, L)
    assert jnp.allclose(out, se_layer_ref(x, *params), atol=1e-5, rtol=1e-5)

    # Case 2: unaligned C (=5) and ragged L (=300), forced through the streaming
    # 2-pass path with 128-wide L tiles to exercise accumulation + tail masking.
    B2, C2, L2, H2 = 2, 5, 300, 32
    x2 = jax.random.normal(kx2, (B2, C2, L2), jnp.float32)
    params2 = init_params(kp2, C2, H2)
    out2 = jax.block_until_ready(
        se_layer(x2, *params2, force_two_pass=True, max_l_tile=128))
    assert out2.shape == (B2, C2, L2)
    assert jnp.allclose(out2, se_layer_ref(x2, *params2), atol=1e-5, rtol=1e-5)

    print("KERNEL_OK")
</pallas_src>

<mosaic_0001>
module attributes {stable_mosaic.version = 11 : i64} {
  func.func @_se_fused_kernel(%arg0: i32, %arg1: memref<1x4x16xf32, #tpu.memory_space<vmem>>, %arg2: memref<32x4xf32, #tpu.memory_space<vmem>>, %arg3: memref<32x1xf32, #tpu.memory_space<vmem>>, %arg4: memref<1x1xf32, #tpu.memory_space<smem>>, %arg5: memref<4x32xf32, #tpu.memory_space<vmem>>, %arg6: memref<4x1xf32, #tpu.memory_space<vmem>>, %arg7: memref<1x4x16xf32, #tpu.memory_space<vmem>>) attributes {dimension_semantics = [#tpu.dimension_semantics<parallel>], iteration_bounds = array<i64: 2>, scalar_prefetch = 0 : i64, scratch_operands = 0 : i64, tpu.core_type = #tpu.core_type<tc>, window_params = [{transform_indices = @transform_0, window_bounds = array<i64: 1, 4, 16>}, {pipeline_mode = #tpu.pipeline_mode<synchronous>, transform_indices = @transform_1, window_bounds = array<i64: 32, 4>}, {pipeline_mode = #tpu.pipeline_mode<synchronous>, transform_indices = @transform_2, window_bounds = array<i64: 32, 1>}, {transform_indices = @transform_3, window_bounds = array<i64: 1, 1>}, {pipeline_mode = #tpu.pipeline_mode<synchronous>, transform_indices = @transform_4, window_bounds = array<i64: 4, 32>}, {pipeline_mode = #tpu.pipeline_mode<synchronous>, transform_indices = @transform_5, window_bounds = array<i64: 4, 1>}, {transform_indices = @transform_6, window_bounds = array<i64: 1, 4, 16>}]} {
    %c0 = arith.constant 0 : index
    %c0_0 = arith.constant 0 : index
    %c0_1 = arith.constant 0 : index
    %0 = vector.load %arg1[%c0, %c0_0, %c0_1] : memref<1x4x16xf32, #tpu.memory_space<vmem>>, vector<1x4x16xf32>
    %1 = vector.shape_cast %0 : vector<1x4x16xf32> to vector<4x16xf32>
    %cst = arith.constant dense<0.000000e+00> : vector<4xf32>
    %2 = vector.multi_reduction <add>, %1, %cst [1] : vector<4x16xf32> to vector<4xf32>
    %3 = vector.shape_cast %2 : vector<4xf32> to vector<4x1xf32>
    %cst_2 = arith.constant 6.250000e-02 : f32
    %4 = vector.broadcast %cst_2 : f32 to vector<4x1xf32>
    %5 = arith.mulf %3, %4 : vector<4x1xf32>
    %c0_3 = arith.constant 0 : index
    %c0_4 = arith.constant 0 : index
    %6 = vector.load %arg2[%c0_3, %c0_4] : memref<32x4xf32, #tpu.memory_space<vmem>>, vector<32x4xf32>
    %cst_5 = arith.constant dense<0.000000e+00> : vector<32x1xf32>
    %7 = tpu.matmul %6, %5, %cst_5 {dimension_numbers = #tpu.dot_dimension_numbers<[1], [0], [0], [1], [0, 0, 1, 1], [], []>} : vector<32x4xf32>, vector<4x1xf32>, vector<32x1xf32> -> vector<32x1xf32>
    %c0_6 = arith.constant 0 : index
    %c0_7 = arith.constant 0 : index
    %8 = vector.load %arg3[%c0_6, %c0_7] : memref<32x1xf32, #tpu.memory_space<vmem>>, vector<32x1xf32>
    %9 = arith.addf %7, %8 : vector<32x1xf32>
    %c0_8 = arith.constant 0 : index
    %c0_9 = arith.constant 0 : index
    %10 = memref.load %arg4[%c0_8, %c0_9] : memref<1x1xf32, #tpu.memory_space<smem>>
    %cst_10 = arith.constant 0.000000e+00 : f32
    %11 = vector.broadcast %cst_10 : f32 to vector<32x1xf32>
    %12 = arith.cmpf oge, %9, %11 : vector<32x1xf32>
    %13 = vector.broadcast %10 : f32 to vector<32x1xf32>
    %14 = arith.mulf %13, %9 : vector<32x1xf32>
    %15 = arith.select %12, %9, %14 : vector<32x1xi1>, vector<32x1xf32>
    %c0_11 = arith.constant 0 : index
    %c0_12 = arith.constant 0 : index
    %16 = vector.load %arg5[%c0_11, %c0_12] : memref<4x32xf32, #tpu.memory_space<vmem>>, vector<4x32xf32>
    %cst_13 = arith.constant dense<0.000000e+00> : vector<4x1xf32>
    %17 = tpu.matmul %16, %15, %cst_13 {dimension_numbers = #tpu.dot_dimension_numbers<[1], [0], [0], [1], [0, 0, 1, 1], [], []>} : vector<4x32xf32>, vector<32x1xf32>, vector<4x1xf32> -> vector<4x1xf32>
    %c0_14 = arith.constant 0 : index
    %c0_15 = arith.constant 0 : index
    %18 = vector.load %arg6[%c0_14, %c0_15] : memref<4x1xf32, #tpu.memory_space<vmem>>, vector<4x1xf32>
    %19 = arith.addf %17, %18 : vector<4x1xf32>
    %20 = arith.negf %19 : vector<4x1xf32>
    %21 = math.exp %20 : vector<4x1xf32>
    %cst_16 = arith.constant 1.000000e+00 : f32
    %22 = vector.broadcast %cst_16 : f32 to vector<4x1xf32>
    %23 = arith.addf %22, %21 : vector<4x1xf32>
    %24 = arith.divf %22, %23 : vector<4x1xf32>
    %25 = vector.broadcast %24 : vector<4x1xf32> to vector<4x16xf32>
    %26 = arith.mulf %1, %25 : vector<4x16xf32>
    %c0_17 = arith.constant 0 : index
    %c0_18 = arith.constant 0 : index
    %c0_19 = arith.constant 0 : index
    %27 = vector.load %arg7[%c0_17, %c0_18, %c0_19] : memref<1x4x16xf32, #tpu.memory_space<vmem>>, vector<1x4x16xf32>
    %28 = vector.shape_cast %27 : vector<1x4x16xf32> to vector<4x16xf32>
    %29 = vector.shape_cast %26 : vector<4x16xf32> to vector<1x4x16xf32>
    tpu.vector_store %arg7[%c0_17, %c0_18, %c0_19], %29 {strides = array<i32>} : memref<1x4x16xf32, #tpu.memory_space<vmem>>, vector<1x4x16xf32>,
    return
  }
  func.func @transform_0(%arg0: i32) -> (i32, i32, i32) {
    %c0_i32 = arith.constant 0 : i32
    %c0_i32_0 = arith.constant 0 : i32
    %c0_i32_1 = arith.constant 0 : i32
    return %arg0, %c0_i32, %c0_i32_0 : i32, i32, i32
  }
  func.func @transform_1(%arg0: i32) -> (i32, i32) {
    %c0_i32 = arith.constant 0 : i32
    %c0_i32_0 = arith.constant 0 : i32
    %c0_i32_1 = arith.constant 0 : i32
    return %c0_i32, %c0_i32_0 : i32, i32
  }
  func.func @transform_2(%arg0: i32) -> (i32, i32) {
    %c0_i32 = arith.constant 0 : i32
    %c0_i32_0 = arith.constant 0 : i32
    %c0_i32_1 = arith.constant 0 : i32
    return %c0_i32, %c0_i32_0 : i32, i32
  }
  func.func @transform_3(%arg0: i32) -> (i32, i32) {
    %c0_i32 = arith.constant 0 : i32
    %c0_i32_0 = arith.constant 0 : i32
    %c0_i32_1 = arith.constant 0 : i32
    return %c0_i32, %c0_i32_0 : i32, i32
  }
  func.func @transform_4(%arg0: i32) -> (i32, i32) {
    %c0_i32 = arith.constant 0 : i32
    %c0_i32_0 = arith.constant 0 : i32
    %c0_i32_1 = arith.constant 0 : i32
    return %c0_i32, %c0_i32_0 : i32, i32
  }
  func.func @transform_5(%arg0: i32) -> (i32, i32) {
    %c0_i32 = arith.constant 0 : i32
    %c0_i32_0 = arith.constant 0 : i32
    %c0_i32_1 = arith.constant 0 : i32
    return %c0_i32, %c0_i32_0 : i32, i32
  }
  func.func @transform_6(%arg0: i32) -> (i32, i32, i32) {
    %c0_i32 = arith.constant 0 : i32
    %c0_i32_0 = arith.constant 0 : i32
    %c0_i32_1 = arith.constant 0 : i32
    return %arg0, %c0_i32, %c0_i32_0 : i32, i32, i32
  }
}

</mosaic_0001>

<llo_original>
// kernel: se_layer.1
$region0: #{se_layer.1}
  #allocation0 [shape = 'u32[]', space=smem, size = 0x4, offset = 0x4, fixed_abs, tag = 'smem constant byte address 0x4 - core index']
  #allocation1 [shape = 'u32[144,128]{1,0:T(1,128)}', space=vmem, size = 0x12000, scoped, tag = 'internal scratch']
  #allocation2 [shape = 'f32[1,1]{1,0:T(1,128)S(6)}', space=smem, size = 0x200, scoped, tag = 'scoped memory for se_layer.1']
  %s0 = inlined_call_operand.vmem [shape: f32[2,4,16], index: 0, kind: input, shape index: {}]
  %s1 = inlined_call_operand.vmem [shape: f32[32,4], index: 1, kind: input, shape index: {}]
  %s2 = inlined_call_operand.vmem [shape: f32[32,1], index: 2, kind: input, shape index: {}]
  %s3 = inlined_call_operand.<no memory space> [shape: f32[1,1], index: 3, kind: input, shape index: {}]
  %s4 = inlined_call_operand.vmem [shape: f32[4,32], index: 4, kind: input, shape index: {}]
  %s5 = inlined_call_operand.vmem [shape: f32[4,1], index: 5, kind: input, shape index: {}]
  %s6 = inlined_call_operand.hbm [shape: f32[2,4,16], index: 6, kind: output, shape index: {}]
  %s7 = sld [smem:[#allocation0]]
  $region57: #{se_layer.1} parent=0
    _
  %s9 = ssub.s32 1, %s7
  %s10 = scalar_select 0, %s9, %s7
  %11 = sst [smem:[#allocation2]] %s3
  $region1: #{se_layer.1} parent=0
    #allocation3 [shape = 'u8[4096]{0}', space=vmem, size = 0x1000, scoped, tag = 'output window, operand 0']
    #allocation4 [shape = 's32[2]{0}', space=sflag, size = 0x8, scoped, tag = 'scoped memory for se_layer.1']
    %12 = vsyncpa [#allocation4], 0
    %s13 = scalar_lea.sflag [#allocation4], 1
    %14 = vsyncpa %s13, 0
    loop: start=0, step=1, limit=4
    $region2: #{se_layer.1} parent=1 // loop_pre_header
      _
    $region3: #{se_layer.1} parent=1 // loop_header
      %s16 = sphi 0, %s20
      %p17 = scmp.ge.s32.totalorder %s16, 4
      %s26 = sphi 0, %s28
      %s29 = sphi 0, %s26
      %s30 = sphi 0, %s29
      %s46 = sphi 0, %s30
      %s50 = sphi 0, %s50
      %s52 = sphi 0, %s50
      %s53 = sphi 0, %s52
      %s67 = sphi 0, %s53
      %s71 = sphi 0, %s71
      %s73 = sphi 0, %s71
      %s74 = sphi 0, %s73
      %s88 = sphi 0, %s74
      %s92 = sphi 0, %s92
      %s94 = sphi 0, %s92
      %s95 = sphi 0, %s94
      %s109 = sphi 0, %s95
      %s113 = sphi 0, %s113
      %s115 = sphi 0, %s113
      %s116 = sphi 0, %s115
      %s130 = sphi 0, %s116
      %s134 = sphi 0, %s134
      %s136 = sphi 0, %s134
      %s137 = sphi 0, %s136
      %s151 = sphi 0, %s137
      %s157 = sphi 0, %s159
      %s160 = sphi 0, %s157
      %s161 = sphi 0, %s160
      %s177 = sphi 0, %s161
    $region4: #{se_layer.1} parent=1 // loop_header_branch
      %19 = sbr.rel (%p17) target = $region8
    $region5: #{se_layer.1} parent=1 // loop_body
      %s21 = ssub.s32 %s16, 1
      %s22 = ssub.s32 %s16, 2
      %s23 = sadd.s32 %s16, 1
      %s24 = ssub.s32 %s16, %s23
      %p25 = scmp.eq.s32.totalorder %s24, 0
      %s27 = sadd.s32 %s26, 1
      %s28 = scalar_select %p25, %s26, %s27
      %p31 = pneg %p25
      %p32 = scmp.eq.s32.totalorder %s16, 1
      %p33 = por %p31, %p32
      %p34 = scmp.ne.s32.totalorder %s26, %s29
      %p35 = scmp.eq.s32.totalorder %s16, 0
      %p36 = por %p34, %p35
      %p37 = scmp.ne.s32.totalorder %s26, %s29
      %p38 = scmp.eq.s32.totalorder %s21, 1
      %p39 = por %p37, %p38
      %p40 = scmp.ne.s32.totalorder %s29, %s30
      %p41 = scmp.eq.s32.totalorder %s21, 0
      %p42 = por %p40, %p41
      %p43 = scmp.ne.s32.totalorder %s29, %s30
      %p44 = scmp.eq.s32.totalorder %s22, 1
      %p45 = por %p43, %p44
      %p47 = scmp.ne.s32.totalorder %s30, %s46
      %p48 = scmp.eq.s32.totalorder %s22, 0
      %p49 = por %p47, %p48
      %s51 = sadd.s32 %s50, 1
      %p54 = scmp.eq.s32.totalorder %s16, 1
      %p55 = scmp.ne.s32.totalorder %s50, %s52
      %p56 = scmp.eq.s32.totalorder %s16, 0
      %p57 = por %p55, %p56
      %p58 = scmp.ne.s32.totalorder %s50, %s52
      %p59 = scmp.eq.s32.totalorder %s21, 1
      %p60 = por %p58, %p59
      %p61 = scmp.ne.s32.totalorder %s52, %s53
      %p62 = scmp.eq.s32.totalorder %s21, 0
      %p63 = por %p61, %p62
      %p64 = scmp.ne.s32.totalorder %s52, %s53
      %p65 = scmp.eq.s32.totalorder %s22, 1
      %p66 = por %p64, %p65
      %p68 = scmp.ne.s32.totalorder %s53, %s67
      %p69 = scmp.eq.s32.totalorder %s22, 0
      %p70 = por %p68, %p69
      %s72 = sadd.s32 %s71, 1
      %p75 = scmp.eq.s32.totalorder %s16, 1
      %p76 = scmp.ne.s32.totalorder %s71, %s73
      %p77 = scmp.eq.s32.totalorder %s16, 0
      %p78 = por %p76, %p77
      %p79 = scmp.ne.s32.totalorder %s71, %s73
      %p80 = scmp.eq.s32.totalorder %s21, 1
      %p81 = por %p79, %p80
      %p82 = scmp.ne.s32.totalorder %s73, %s74
      %p83 = scmp.eq.s32.totalorder %s21, 0
      %p84 = por %p82, %p83
      %p85 = scmp.ne.s32.totalorder %s73, %s74
      %p86 = scmp.eq.s32.totalorder %s22, 1
      %p87 = por %p85, %p86
      %p89 = scmp.ne.s32.totalorder %s74, %s88
      %p90 = scmp.eq.s32.totalorder %s22, 0
      %p91 = por %p89, %p90
      %s93 = sadd.s32 %s92, 1
      %p96 = scmp.eq.s32.totalorder %s16, 1
      %p97 = scmp.ne.s32.totalorder %s92, %s94
      %p98 = scmp.eq.s32.totalorder %s16, 0
      %p99 = por %p97, %p98
      %p100 = scmp.ne.s32.totalorder %s92, %s94
      %p101 = scmp.eq.s32.totalorder %s21, 1
      %p102 = por %p100, %p101
      %p103 = scmp.ne.s32.totalorder %s94, %s95
      %p104 = scmp.eq.s32.totalorder %s21, 0
      %p105 = por %p103, %p104
      %p106 = scmp.ne.s32.totalorder %s94, %s95
      %p107 = scmp.eq.s32.totalorder %s22, 1
      %p108 = por %p106, %p107
      %p110 = scmp.ne.s32.totalorder %s95, %s109
      %p111 = scmp.eq.s32.totalorder %s22, 0
      %p112 = por %p110, %p111
      %s114 = sadd.s32 %s113, 1
      %p117 = scmp.eq.s32.totalorder %s16, 1
      %p118 = scmp.ne.s32.totalorder %s113, %s115
      %p119 = scmp.eq.s32.totalorder %s16, 0
      %p120 = por %p118, %p119
      %p121 = scmp.ne.s32.totalorder %s113, %s115
      %p122 = scmp.eq.s32.totalorder %s21, 1
      %p123 = por %p121, %p122
      %p124 = scmp.ne.s32.totalorder %s115, %s116
      %p125 = scmp.eq.s32.totalorder %s21, 0
      %p126 = por %p124, %p125
      %p127 = scmp.ne.s32.totalorder %s115, %s116
      %p128 = scmp.eq.s32.totalorder %s22, 1
      %p129 = por %p127, %p128
      %p131 = scmp.ne.s32.totalorder %s116, %s130
      %p132 = scmp.eq.s32.totalorder %s22, 0
      %p133 = por %p131, %p132
      %s135 = sadd.s32 %s134, 1
      %p138 = scmp.eq.s32.totalorder %s16, 1
      %p139 = scmp.ne.s32.totalorder %s134, %s136
      %p140 = scmp.eq.s32.totalorder %s16, 0
      %p141 = por %p139, %p140
      %p142 = scmp.ne.s32.totalorder %s134, %s136
      %p143 = scmp.eq.s32.totalorder %s21, 1
      %p144 = por %p142, %p143
      %p145 = scmp.ne.s32.totalorder %s136, %s137
      %p146 = scmp.eq.s32.totalorder %s21, 0
      %p147 = por %p145, %p146
      %p148 = scmp.ne.s32.totalorder %s136, %s137
      %p149 = scmp.eq.s32.totalorder %s22, 1
      %p150 = por %p148, %p149
      %p152 = scmp.ne.s32.totalorder %s137, %s151
      %p153 = scmp.eq.s32.totalorder %s22, 0
      %p154 = por %p152, %p153
      %s155 = ssub.s32 %s16, %s23
      %p156 = scmp.eq.s32.totalorder %s155, 0
      %s158 = sadd.s32 %s157, 1
      %s159 = scalar_select %p156, %s157, %s158
      %p162 = pneg %p156
      %p163 = scmp.eq.s32.totalorder %s16, 1
      %p164 = por %p162, %p163
      %p165 = scmp.ne.s32.totalorder %s157, %s160
      %p166 = scmp.eq.s32.totalorder %s16, 0
      %p167 = por %p165, %p166
      %p168 = scmp.ne.s32.totalorder %s157, %s160
      %p169 = scmp.eq.s32.totalorder %s21, 1
      %p170 = por %p168, %p169
      %p171 = scmp.ne.s32.totalorder %s160, %s161
      %p172 = scmp.eq.s32.totalorder %s21, 0
      %p173 = por %p171, %p172
      %p174 = scmp.ne.s32.totalorder %s160, %s161
      %p175 = scmp.eq.s32.totalorder %s22, 1
      %p176 = por %p174, %p175
      %p178 = scmp.ne.s32.totalorder %s161, %s177
      %p179 = scmp.eq.s32.totalorder %s22, 0
      %p180 = por %p178, %p179
      %p181 = scmp.le.s32.totalorder 1, %s16
      %p182 = scmp.lt.s32.totalorder %s16, 3
      %p183 = pnand %p181, %p182
      %p184 = pneg %p183
      // Predicated region
      $region9: #{se_layer.1} parent=5 // pred_check
        _
      $region10: #{se_layer.1} parent=5 // pred_check_branch
        %186 = sbr.rel (%p183) target = $region12
      $region11: #{se_layer.1} parent=5 // pred_region
        %s187 = ssub.s32 %s16, 1
        // Predicated region
        $region13: #{se_layer.1} parent=11 // pred_check
          %p188 = pneg %p63
        $region14: #{se_layer.1} parent=11 // pred_check_branch
          %190 = sbr.rel (%p188) target = $region16
        $region15: #{se_layer.1} parent=11 // pred_region
          _
        $region16: #{se_layer.1} parent=11 // pred_fallthru
          _
        // Predicated region
        $region17: #{se_layer.1} parent=11 // pred_check
          %p191 = pneg %p84
        $region18: #{se_layer.1} parent=11 // pred_check_branch
          %193 = sbr.rel (%p191) target = $region20
        $region19: #{se_layer.1} parent=11 // pred_region
          _
        $region20: #{se_layer.1} parent=11 // pred_fallthru
          _
        // Predicated region
        $region21: #{se_layer.1} parent=11 // pred_check
          %p194 = pneg %p105
        $region22: #{se_layer.1} parent=11 // pred_check_branch
          %196 = sbr.rel (%p194) target = $region24
        $region23: #{se_layer.1} parent=11 // pred_region
          _
        $region24: #{se_layer.1} parent=11 // pred_fallthru
          _
        // Predicated region
        $region25: #{se_layer.1} parent=11 // pred_check
          %p197 = pneg %p126
        $region26: #{se_layer.1} parent=11 // pred_check_branch
          %199 = sbr.rel (%p197) target = $region28
        $region27: #{se_layer.1} parent=11 // pred_region
          _
        $region28: #{se_layer.1} parent=11 // pred_fallthru
          _
        // Predicated region
        $region29: #{se_layer.1} parent=11 // pred_check
          %p200 = pneg %p147
        $region30: #{se_layer.1} parent=11 // pred_check_branch
          %202 = sbr.rel (%p200) target = $region32
        $region31: #{se_layer.1} parent=11 // pred_region
          _
        $region32: #{se_layer.1} parent=11 // pred_fallthru
          _
      $region12: #{se_layer.1} parent=5 // pred_fallthru
        _
      %p203 = scmp.lt.s32.totalorder %s16, 2
      // Predicated region
      $region33: #{se_layer.1} parent=5 // pred_check
        %p204 = pneg %p203
      $region34: #{se_layer.1} parent=5 // pred_check_branch
        %206 = sbr.rel (%p204) target = $region36
      $region35: #{se_layer.1} parent=5 // pred_region
        // Predicated region
        $region37: #{se_layer.1} parent=35 // pred_check
          %p207 = pneg %p36
        $region38: #{se_layer.1} parent=35 // pred_check_branch
          %209 = sbr.rel (%p207) target = $region40
        $region39: #{se_layer.1} parent=35 // pred_region
          %p210 = scmp.lt.s32.totalorder %s16, 1
          %s211 = scalar_select %p210, %s16, 1
          %s212 = smul.addr %s211, 4
          %s213 = scalar_lea.vmem %s0, %s212
        $region40: #{se_layer.1} parent=35 // pred_fallthru
          _
      $region36: #{se_layer.1} parent=5 // pred_fallthru
        _
      %p214 = scmp.le.s32.totalorder 1, %s16
      %p215 = scmp.lt.s32.totalorder %s16, 3
      %p216 = pnand %p214, %p215
      %p217 = pneg %p216
      // Predicated region
      $region41: #{se_layer.1} parent=5 // pred_check
        _
      $region42: #{se_layer.1} parent=5 // pred_check_branch
        %219 = sbr.rel (%p216) target = $region44
      $region43: #{se_layer.1} parent=5 // pred_region
        %s220 = ssub.s32 %s16, 1
        %p221 = scmp.lt.s32.totalorder %s21, 1
        %s222 = scalar_select %p221, %s21, 1
        %s223 = smul.addr %s222, 4
        %s224 = scalar_lea.vmem %s0, %s223
        %p225 = pneg %p42
        %p226 = pneg %p39
        %p227 = pneg %p63
        %p228 = pneg %p60
        %p229 = pneg %p84
        %p230 = pneg %p81
        %p231 = pneg %p105
        %p232 = pneg %p102
        %p233 = pneg %p126
        %p234 = pneg %p123
        %p235 = pneg %p147
        %p236 = pneg %p144
        %p237 = pneg %p173
        %p238 = pneg %p170
        %s239 = sand.u32 %s160, 1
        %s240 = scalar_lea.sflag [#allocation4], %s239
        %s241 = sand.u32 %s160, 1
        %s242 = smul.addr %s241, 4
        %s243 = scalar_lea.vmem [#allocation3], %s242
        %p244 = scmp.lt.s32.totalorder %s21, 1
        %s245 = scalar_select %p244, %s21, 1
        %s246 = smul.addr %s245, 4
        %s247 = scalar_lea.vmem %s0, %s246
        %v248 = vld [vmem:[%s247] sm:$0xf]
        %vm249 = vcmask 125952
        %v250 = vsel %vm249, %v248, 0.0
        %251 = vadd.xlane.f32.xlu0 %v250
        %v252 = vpop.xlane.xlu0 %251
        %v253 = vmul.f32 %v252, 0.0625
        %v254 = vld [vmem:[%s1] sm:$0xff]
        %v255 = vld [vmem:[%s1 + $0x8] sm:$0xff]
        %v256 = vld [vmem:[%s1 + $0x10] sm:$0xff]
        %v257 = vld [vmem:[%s1 + $0x18] sm:$0xff]
        %v258 = vld [vmem:[%s2] sm:$0xff]
        %v259 = vld [vmem:[%s2 + $0x8] sm:$0xff]
        %v260 = vld [vmem:[%s2 + $0x10] sm:$0xff]
        %v261 = vld [vmem:[%s2 + $0x18] sm:$0xff]
        %vm262 = vcmask 31744
        %v264 = vsel %vm262, %v254, 0
        %v267 = vsel %vm262, %v255, 0
        %v270 = vsel %vm262, %v256, 0
        %v273 = vsel %vm262, %v257, 0
        %vm275 = vcmask 1043456
        %v277 = vsel %vm275, %v253, 0
        %279 = vmatprep.subr.mxu0 0.0
        %280 = vmatpush1.msra.mxu0 %v277
        %281 = vmatprep.subr.mxu0 0.0
        %282 = vmatpush1.msra.mxu0 0.0
        %283 = vmatprep.subr.mxu0 0.0
        %284 = vmatpush1.msra.mxu0 0.0
        %285 = vmatprep.subr.mxu0 0.0
        %286 = vmatpush1.msra.mxu0 0.0
        %287 = vmatprep.subr.mxu0 0.0
        %288 = vmatpush1.msra.mxu0 0.0
        %289 = vmatprep.subr.mxu0 0.0
        %290 = vmatpush1.msra.mxu0 0.0
        %291 = vmatprep.subr.mxu0 0.0
        %292 = vmatpush1.msra.mxu0 0.0
        %293 = vmatprep.subr.mxu0 0.0
        %294 = vmatpush1.msra.mxu0 0.0
        %295 = vmatprep.subr.mxu0 0.0
        %296 = vmatpush1.msra.mxu0 0.0
        %297 = vmatprep.subr.mxu0 0.0
        %298 = vmatpush1.msra.mxu0 0.0
        %299 = vmatprep.subr.mxu0 0.0
        %300 = vmatpush1.msra.mxu0 0.0
        %301 = vmatprep.subr.mxu0 0.0
        %302 = vmatpush1.msra.mxu0 0.0
        %303 = vmatprep.subr.mxu0 0.0
        %304 = vmatpush1.msra.mxu0 0.0
        %305 = vmatprep.subr.mxu0 0.0
        %306 = vmatpush1.msra.mxu0 0.0
        %307 = vmatprep.subr.mxu0 0.0
        %308 = vmatpush1.msra.mxu0 0.0
        %309 = vmatprep.subr.mxu0 0.0
        %310 = vmatpush1.msra.mxu0 0.0
        %311 = vmatprep.subr.mxu0 0.0
        %312 = vmatpush1.msra.mxu0 0.0
        %313 = vmatprep.subr.mxu0 0.0
        %314 = vmatpush1.msra.mxu0 0.0
        %315 = vmatprep.subr.mxu0 0.0
        %316 = vmatpush1.msra.mxu0 0.0
        %317 = vmatprep.subr.mxu0 0.0
        %318 = vmatpush1.msra.mxu0 0.0
        %319 = vmatprep.subr.mxu0 0.0
        %320 = vmatpush1.msra.mxu0 0.0
        %321 = vmatprep.subr.mxu0 0.0
        %322 = vmatpush1.msra.mxu0 0.0
        %323 = vmatprep.subr.mxu0 0.0
        %324 = vmatpush1.msra.mxu0 0.0
        %325 = vmatprep.subr.mxu0 0.0
        %326 = vmatpush1.msra.mxu0 0.0
        %327 = vmatprep.subr.mxu0 0.0
        %328 = vmatpush1.msra.mxu0 0.0
        %329 = vmatprep.subr.mxu0 0.0
        %330 = vmatpush1.msra.mxu0 0.0
        %331 = vmatprep.subr.mxu0 0.0
        %332 = vmatpush1.msra.mxu0 0.0
        %333 = vmatprep.subr.mxu0 0.0
        %334 = vmatpush1.msra.mxu0 0.0
        %335 = vmatprep.subr.mxu0 0.0
        %336 = vmatpush1.msra.mxu0 0.0
        %337 = vmatprep.subr.mxu0 0.0
        %338 = vmatpush1.msra.mxu0 0.0
        %339 = vmatprep.subr.mxu0 0.0
        %340 = vmatpush1.msra.mxu0 0.0
        %341 = vmatprep.subr.mxu0 0.0
        %342 = vmatpush1.msra.mxu0 0.0
        %343 = vmatprep.mubr.f32.mxu0 0.0
        %344 = vmatmul.mubr.f32.gmra.mrb[0].mxu0 %v264
        %v345 = vpop.f32.mrb[0].mxu0
        %v346 = vadd.f32 %v258, %v345
        %v347 = vpop.f32.mrb[0].mxu0
        %348 = vmatprep.mubr.f32.mxu0 0.0
        %349 = vmatmul.mubr.f32.gmra.mrb[0].mxu0 %v267
        %v350 = vpop.f32.mrb[0].mxu0
        %v351 = vadd.f32 %v259, %v350
        %v352 = vpop.f32.mrb[0].mxu0
        %353 = vmatprep.mubr.f32.mxu0 0.0
        %354 = vmatmul.mubr.f32.gmra.mrb[0].mxu0 %v270
        %v355 = vpop.f32.mrb[0].mxu0
        %v356 = vadd.f32 %v260, %v355
        %v357 = vpop.f32.mrb[0].mxu0
        %358 = vmatprep.mubr.f32.mxu0 0.0
        %359 = vmatmul.mubr.f32.gmra.mrb[0].mxu0 %v273
        %v360 = vpop.f32.mrb[0].mxu0
        %v361 = vadd.f32 %v261, %v360
        %v362 = vpop.f32.mrb[0].mxu0
        %363 = vdwg.mxu0
        %s364 = sld [smem:[#allocation2]]
        %vm365 = vcmp.ge.f32.partialorder %v346, 0.0
        %vm366 = vcmp.ge.f32.partialorder %v351, 0.0
        %vm367 = vcmp.ge.f32.partialorder %v356, 0.0
        %vm368 = vcmp.ge.f32.partialorder %v361, 0.0
        %v369 = vstv %s364
        %v370 = vmul.f32 %v369, %v346
        %v371 = vmul.f32 %v369, %v351
        %v372 = vmul.f32 %v369, %v356
        %v373 = vmul.f32 %v369, %v361
        %v374 = vsel %vm365, %v346, %v370
        %v375 = vsel %vm366, %v351, %v371
        %v376 = vsel %vm367, %v356, %v372
        %v377 = vsel %vm368, %v361, %v373
        %v378 = vld [vmem:[%s4] sm:$0xf]
        %v379 = vld [vmem:[%s5] sm:$0xf]
        %vm380 = vcmask 261120
        %v382 = vsel %vm380, %v378, 0
        %384 = vmatprep.subr.mxu0 0.0
        %385 = vmatpush1.msra.mxu0 %v374
        %386 = vmatprep.subr.mxu0 0.0
        %387 = vmatpush1.msra.mxu0 %v375
        %388 = vmatprep.subr.mxu0 0.0
        %389 = vmatpush1.msra.mxu0 %v376
        %390 = vmatprep.subr.mxu0 0.0
        %391 = vmatpush1.msra.mxu0 %v377
        %392 = vmatprep.subr.mxu0 0.0
        %393 = vmatpush1.msra.mxu0 0.0
        %394 = vmatprep.subr.mxu0 0.0
        %395 = vmatpush1.msra.mxu0 0.0
        %396 = vmatprep.subr.mxu0 0.0
        %397 = vmatpush1.msra.mxu0 0.0
        %398 = vmatprep.subr.mxu0 0.0
        %399 = vmatpush1.msra.mxu0 0.0
        %400 = vmatprep.subr.mxu0 0.0
        %401 = vmatpush1.msra.mxu0 0.0
        %402 = vmatprep.subr.mxu0 0.0
        %403 = vmatpush1.msra.mxu0 0.0
        %404 = vmatprep.subr.mxu0 0.0
        %405 = vmatpush1.msra.mxu0 0.0
        %406 = vmatprep.subr.mxu0 0.0
        %407 = vmatpush1.msra.mxu0 0.0
        %408 = vmatprep.subr.mxu0 0.0
        %409 = vmatpush1.msra.mxu0 0.0
        %410 = vmatprep.subr.mxu0 0.0
        %411 = vmatpush1.msra.mxu0 0.0
        %412 = vmatprep.subr.mxu0 0.0
        %413 = vmatpush1.msra.mxu0 0.0
        %414 = vmatprep.subr.mxu0 0.0
        %415 = vmatpush1.msra.mxu0 0.0
        %416 = vmatprep.subr.mxu0 0.0
        %417 = vmatpush1.msra.mxu0 0.0
        %418 = vmatprep.subr.mxu0 0.0
        %419 = vmatpush1.msra.mxu0 0.0
        %420 = vmatprep.subr.mxu0 0.0
        %421 = vmatpush1.msra.mxu0 0.0
        %422 = vmatprep.subr.mxu0 0.0
        %423 = vmatpush1.msra.mxu0 0.0
        %424 = vmatprep.subr.mxu0 0.0
        %425 = vmatpush1.msra.mxu0 0.0
        %426 = vmatprep.subr.mxu0 0.0
        %427 = vmatpush1.msra.mxu0 0.0
        %428 = vmatprep.subr.mxu0 0.0
        %429 = vmatpush1.msra.mxu0 0.0
        %430 = vmatprep.subr.mxu0 0.0
        %431 = vmatpush1.msra.mxu0 0.0
        %432 = vmatprep.subr.mxu0 0.0
        %433 = vmatpush1.msra.mxu0 0.0
        %434 = vmatprep.subr.mxu0 0.0
        %435 = vmatpush1.msra.mxu0 0.0
        %436 = vmatprep.subr.mxu0 0.0
        %437 = vmatpush1.msra.mxu0 0.0
        %438 = vmatprep.subr.mxu0 0.0
        %439 = vmatpush1.msra.mxu0 0.0
        %440 = vmatprep.subr.mxu0 0.0
        %441 = vmatpush1.msra.mxu0 0.0
        %442 = vmatprep.subr.mxu0 0.0
        %443 = vmatpush1.msra.mxu0 0.0
        %444 = vmatprep.subr.mxu0 0.0
        %445 = vmatpush1.msra.mxu0 0.0
        %446 = vmatprep.subr.mxu0 0.0
        %447 = vmatpush1.msra.mxu0 0.0
        %448 = vmatprep.mubr.f32.mxu0 0.0
        %449 = vmatmul.mubr.f32.gmra.mrb[0].mxu0 %v382
        %v450 = vpop.f32.mrb[0].mxu0
        %v451 = vadd.f32 %v379, %v450
        %v452 = vpop.f32.mrb[0].mxu0
        %453 = vdwg.mxu0
        %v454 = vxor.u32 %v451, 2147483648
        %v455 = vmul.f32 %v454, 1.442695
        %v456 = vpow.pop %v455
        %v457 = vadd.f32 %v456, 1.0
        %v458 = vrcp.pop %v457
        %v459 = vmul.f32 1.0, %v458
        %461 = vset.pattern.permute.xlu0 0
        %462 = vperm.xlu0 %461, %v459
        %v463 = vpop.permute.xlu0 %462
        %v465 = vmul.f32 %v248, %v463
        %466 = vst.msk [vmem:[%s243] sm:$0xf] %vm249, %v465
        %s467 = sand.u32 %s160, 1
        %s468 = scalar_lea.sflag [#allocation4], %s467
        %s469 = sand.u32 %s160, 1
        %s470 = smul.addr %s469, 4
        %s471 = scalar_lea.vmem [#allocation3], %s470
        // Predicated region
        $region45: #{se_layer.1} parent=43 // pred_check
          %p472 = pneg %p170
        $region46: #{se_layer.1} parent=43 // pred_check_branch
          %474 = sbr.rel (%p472) target = $region48
        $region47: #{se_layer.1} parent=43 // pred_region
          %s476 = ssub.s32 64, 64
          %477 = vsyncadd %s468, %s476
          %s478 = smul.addr %s21, 64
          %s479 = scalar_lea.hbm %s6, %s478
          %s481 = sshll.u32 %s471, 4
          %s482 = int_to_ptr.vmem [resolvable:$true] %s481
          %484 = dma.vmem_to_hbm [thread:$0]  %s482, 64, %s479, %s468
        $region48: #{se_layer.1} parent=43 // pred_fallthru
          _
      $region44: #{se_layer.1} parent=5 // pred_fallthru
        _
      %p485 = scmp.le.s32.totalorder 2, %s16
      // Predicated region
      $region49: #{se_layer.1} parent=5 // pred_check
        %p486 = pneg %p485
      $region50: #{se_layer.1} parent=5 // pred_check_branch
        %488 = sbr.rel (%p486) target = $region52
      $region51: #{se_layer.1} parent=5 // pred_region
        %s489 = ssub.s32 %s16, 2
        // Predicated region
        $region53: #{se_layer.1} parent=51 // pred_check
          %p490 = pneg %p176
        $region54: #{se_layer.1} parent=51 // pred_check_branch
          %492 = sbr.rel (%p490) target = $region56
        $region55: #{se_layer.1} parent=51 // pred_region
          %s493 = sand.u32 %s161, 1
          %s494 = scalar_lea.sflag [#allocation4], %s493
          %s495 = sand.u32 %s161, 1
          %s496 = smul.addr %s495, 4
          %s497 = scalar_lea.vmem [#allocation3], %s496
          %498 = dma.done %s494, 64
        $region56: #{se_layer.1} parent=51 // pred_fallthru
          _
      $region52: #{se_layer.1} parent=5 // pred_fallthru
        _
    $region6: #{se_layer.1} parent=1 // loop_footer
      %s20 = sadd.s32 1, %s16
    $region7: #{se_layer.1} parent=1 // loop_footer_branch
      %15 = sbr.rel target = $region3
    $region8: #{se_layer.1} parent=1 // loop_exit
      _
    %499 = vsyncpa [#allocation4], 1
    %s500 = scalar_lea.sflag [#allocation4], 1
    %501 = vsyncpa %s500, 1

</llo_original>
